<compile_context>
chip_gen: v6e
topology: v6e:2x2x1
jax: 0.10.0
libtpu: 0.0.40
codegen_flags: <defaults>
</compile_context>

<pallas_src>
import jax
import jax.numpy as jnp
from jax import lax
from jax.experimental import pallas as pl
from jax.experimental.pallas import tpu as pltpu

M_FEAT = 500                    # module's self.M
L_FEAT = 128                    # module's self.L
STACK_COLS = 2 * L_FEAT + 1     # [att_V | att_U | class] -> 257 output columns
STACK_PAD = 384                 # lane-aligned (3 * 128) padded stacked dim

# torchvision resnet18 layer config: (in_ch, out_ch, stride) per BasicBlock.
# Static Python constant so strides never enter the jitted pytree.
RESNET18_CFG = ((64, 64, 1), (64, 64, 1),
                (64, 128, 2), (128, 128, 1),
                (128, 256, 2), (256, 256, 1),
                (256, 512, 2), (512, 512, 1))


# ----------------------------------------------------------------------------
# Pallas kernel: fused MIL gated-attention head (natural N-on-sublanes layout)
#
#   G      = feat @ [Wv' | Wu' | Wc'] + [bv' | bu' | bz']     (N, 384)  one MXU push
#   A_V    = tanh(G[:, 0:128]);  A_U = sigmoid(G[:, 128:256])
#   z      = G[:, 256:257]                                    (== H @ Wc, incl. bias)
#   logits = sum_lanes((A_V*A_U) * ww_row) + bw               (N, 1)   VPU + lane reduce
#   A      = softmax(logits over N)                           (N, 1)   sublane reduction
#   Y      = sigmoid(sum_N(A * z) + bc)                       (== sigmoid(class_1(A@H)))
# ----------------------------------------------------------------------------
def mil_head_kernel(feat_ref,             # (N, 512)  f32   pooled resnet features
                    wstack_ref,           # (512, 384) bf16  [Wv'|Wu'|Wc'|0] folded weights
                    bstack_ref,           # (1, 384)  f32   lane-major folded biases
                    ww_ref, bw_ref,       # (1, 128) / (1, 1) f32  weig (L->1)
                    bc_ref,               # (1, 1)   f32    class_1 bias
                    yprob_ref, yclass_ref, a_ref):
    ft = feat_ref[...].astype(jnp.bfloat16)                               # (N, 512)

    # Single stacked projection for att_V / att_U / class (f32 accumulation).
    g = jnp.dot(ft, wstack_ref[...],
                preferred_element_type=jnp.float32) + bstack_ref[...]     # (N, 384)

    a_v = jnp.tanh(g[:, 0:L_FEAT])                                        # (N, 128)
    a_u = jax.nn.sigmoid(g[:, L_FEAT:2 * L_FEAT])                         # (N, 128)
    z = g[:, 2 * L_FEAT:2 * L_FEAT + 1]                                   # (N, 1) == H @ Wc

    gated = a_v * a_u                                                     # (N, 128) f32

    # weig (L -> K=1) as a VPU broadcast-multiply + lane reduce (no f32 MXU).
    logits = jnp.sum(gated * ww_ref[...], axis=-1, keepdims=True) + bw_ref[...]   # (N, 1)

    # softmax over the N bag instances (sublane axis), exact normalization.
    m = jnp.max(logits, axis=0, keepdims=True)
    p = jnp.exp(logits - m)
    a_col = p / jnp.sum(p, axis=0, keepdims=True)                         # (N, 1)
    a_ref[...] = a_col

    # classifier: Y = sigmoid(class_1(A @ H)) == sigmoid(sum_n A_n * z_n + bc)
    y = jax.nn.sigmoid(jnp.sum(a_col * z, axis=0, keepdims=True) + bc_ref[...])
    yprob_ref[...] = y
    yclass_ref[...] = (y >= 0.5).astype(jnp.float32)


def mil_head(feat, prepared_head):
    """feat: (N, 512) f32 pooled resnet features -> (Y_prob, Y_class, A)."""
    n = feat.shape[0]
    vmem = pl.BlockSpec(memory_space=pltpu.MemorySpace.VMEM)
    out_shapes = (
        jax.ShapeDtypeStruct((1, 1), jnp.float32),       # Y_prob
        jax.ShapeDtypeStruct((1, 1), jnp.float32),       # Y_class
        jax.ShapeDtypeStruct((n, 1), jnp.float32),       # A column (N, 1)
    )
    # TODO(synk): for large bags (N >= 128 on v5e, >= 256 on v6e/v7x) switch to
    #             a transposed lane-dense layout and tile N with a grid
    #             ("arbitrary" N axis, online softmax in VMEM scratch, N tiles
    #             multiples of 256 on v6e/v7x, capped ~2048 on v7x's 64 MiB VMEM).
    y_prob, y_class, a_col = pl.pallas_call(
        mil_head_kernel,
        out_shape=out_shapes,
        in_specs=[vmem] * 6,
        out_specs=(vmem, vmem, vmem),
    )(feat, *prepared_head)
    # Module returns A transposed to (K, N) = (1, N); (N,1)->(1,N) is a trivial
    # metadata reshape of a column vector done in the wrapper.
    return y_prob, y_class, a_col.reshape(1, n)


# ----------------------------------------------------------------------------
# One-time head-weight preparation (exact fold + stack + pad + bf16 cast).
# No nonlinearity exists anywhere in fc -> linear_1 -> linear_2 -> {att_V_1,
# att_U_1, class_1}, so the fold is mathematically exact (up to bf16 storage).
# ----------------------------------------------------------------------------
def prepare_head_params(fc_w, fc_b, head_params):
    (w1, b1, w2, b2, wv, bv, wu, bu, ww, bw, wc, bc) = head_params

    # H = feat @ W_fused + b_fused
    w_fused = fc_w @ w1 @ w2                          # (512, 500)
    b_fused = (fc_b @ w1 + b1) @ w2 + b2              # (1, 500)

    # Fold W_fused into the three downstream projections.
    wv_f = w_fused @ wv                               # (512, 128)
    bv_f = b_fused @ wv + bv                          # (1, 128)
    wu_f = w_fused @ wu                               # (512, 128)
    bu_f = b_fused @ wu + bu                          # (1, 128)
    wc_f = w_fused @ wc                               # (512, 1)
    bz_f = b_fused @ wc                               # (1, 1)   (class_1 bias bc added in-kernel)

    pad = STACK_PAD - STACK_COLS                      # 127 zero columns (lane alignment)
    w_stack = jnp.concatenate(
        [wv_f, wu_f, wc_f, jnp.zeros((w_fused.shape[0], pad), jnp.float32)], axis=1)
    b_stack = jnp.concatenate(
        [bv_f, bu_f, bz_f, jnp.zeros((1, pad), jnp.float32)], axis=1)

    return (
        w_stack.astype(jnp.bfloat16),   # (512, 384) stacked folded weight
        b_stack,                        # (1, 384)   f32 lane-major biases
        ww.T,                           # (1, 128)   f32 weig row (VPU path)
        bw,                             # (1, 1)
        bc,                             # (1, 1)
    )


def prepare_backbone_params(params):
    """One-time prep: cast conv weights to bf16 (halves per-call weight HBM
    traffic, removes per-call converts).  BN affine params stay f32; the fc
    weights are dropped here (folded into the head)."""
    def c(w):
        return w.astype(jnp.bfloat16)

    blocks = []
    for blk in params["blocks"]:
        nb = {"conv1": c(blk["conv1"]), "bn1": blk["bn1"],
              "conv2": c(blk["conv2"]), "bn2": blk["bn2"]}
        if "down_w" in blk:
            nb["down_w"] = c(blk["down_w"])
            nb["down_bn"] = blk["down_bn"]
        blocks.append(nb)
    return {"conv1": c(params["conv1"]), "bn1": params["bn1"], "blocks": blocks}


# ----------------------------------------------------------------------------
# ResNet18 backbone — plain JAX, NHWC/HWIO (TPU-native conv path), bf16 convs
# with f32 accumulation; train-mode BatchNorm like the PyTorch module (never
# put in eval()).
# TODO(synk): the conv/BN/pool backbone stays in plain JAX (lax.conv) rather
#             than a hand-written Pallas conv kernel.
# ----------------------------------------------------------------------------
def conv2d(x, w, stride, padding):
    return lax.conv_general_dilated(
        x.astype(jnp.bfloat16), w.astype(jnp.bfloat16),   # w pre-cast: no-op convert
        window_strides=(stride, stride),
        padding=((padding, padding), (padding, padding)),
        dimension_numbers=("NHWC", "HWIO", "NHWC"),
        preferred_element_type=jnp.float32)


def batchnorm_train(x, gamma, beta, eps=1e-5):
    mean = jnp.mean(x, axis=(0, 1, 2), keepdims=True)
    var = jnp.mean(jnp.square(x - mean), axis=(0, 1, 2), keepdims=True)
    xhat = (x - mean) * lax.rsqrt(var + eps)
    return xhat * gamma.reshape(1, 1, 1, -1) + beta.reshape(1, 1, 1, -1)


def maxpool_3x3_s2(x):
    return lax.reduce_window(
        x, -jnp.inf, lax.max,
        window_dimensions=(1, 3, 3, 1),
        window_strides=(1, 2, 2, 1),
        padding=((0, 0), (1, 1), (1, 1), (0, 0)))


def basic_block(x, p, stride):
    identity = x
    out = conv2d(x, p["conv1"], stride, 1)
    out = batchnorm_train(out, *p["bn1"])
    out = jax.nn.relu(out)
    out = conv2d(out, p["conv2"], 1, 1)
    out = batchnorm_train(out, *p["bn2"])
    if "down_w" in p:
        identity = conv2d(x, p["down_w"], stride, 0)
        identity = batchnorm_train(identity, *p["down_bn"])
    return jax.nn.relu(out + identity)


def resnet18_pooled(params, x_nchw):
    """x: (N, 3, H, W) NCHW -> pooled features (N, 512)."""
    x = jnp.transpose(x_nchw, (0, 2, 3, 1))          # -> NHWC
    x = conv2d(x, params["conv1"], 2, 3)
    x = batchnorm_train(x, *params["bn1"])
    x = jax.nn.relu(x)
    x = maxpool_3x3_s2(x)
    for blk, (_, _, stride) in zip(params["blocks"], RESNET18_CFG):
        x = basic_block(x, blk, stride)
    return jnp.mean(x, axis=(1, 2))                  # adaptive avg pool + flatten


# ----------------------------------------------------------------------------
# Deterministic synthetic parameter init (weights stored (in, out); bias (1, out))
# ----------------------------------------------------------------------------
def init_resnet18_params(key):
    keys = iter(jax.random.split(key, 64))

    def conv_w(kh, kw, in_c, out_c):
        fan_in = in_c * kh * kw
        return (jax.random.normal(next(keys), (kh, kw, in_c, out_c), jnp.float32)
                * (2.0 / fan_in) ** 0.5)

    def bn(c):
        return (jnp.ones((c,), jnp.float32), jnp.zeros((c,), jnp.float32))

    params = {"conv1": conv_w(7, 7, 3, 64), "bn1": bn(64)}

    def make_block(in_c, out_c, stride):
        blk = {"conv1": conv_w(3, 3, in_c, out_c), "bn1": bn(out_c),
               "conv2": conv_w(3, 3, out_c, out_c), "bn2": bn(out_c)}
        if stride != 1 or in_c != out_c:
            blk["down_w"] = conv_w(1, 1, in_c, out_c)
            blk["down_bn"] = bn(out_c)
        return blk

    params["blocks"] = [make_block(*cfg) for cfg in RESNET18_CFG]

    # resnet18 fc: 512 -> 1000
    params["fc_w"] = (jax.random.normal(next(keys), (512, 1000), jnp.float32)
                      * (1.0 / 512) ** 0.5)
    params["fc_b"] = jnp.zeros((1, 1000), jnp.float32)
    return params


def init_head_params(key):
    ks = jax.random.split(key, 6)

    def lin(k, din, dout):
        w = jax.random.normal(k, (din, dout), jnp.float32) * (1.0 / din) ** 0.5
        b = jnp.zeros((1, dout), jnp.float32)
        return w, b

    M, L, K = M_FEAT, L_FEAT, 1
    w1, b1 = lin(ks[0], 1000, 700)   # linear_1
    w2, b2 = lin(ks[1], 700, M)      # linear_2
    wv, bv = lin(ks[2], M, L)        # att_V_1
    wu, bu = lin(ks[3], M, L)        # att_U_1
    ww, bw = lin(ks[4], L, K)        # weig
    wc, bc = lin(ks[5], M * K, 1)    # class_1
    return (w1, b1, w2, b2, wv, bv, wu, bu, ww, bw, wc, bc)


# ----------------------------------------------------------------------------
# Pure-JAX reference of the MIL head (unfolded, f32) — correctness check only.
# ----------------------------------------------------------------------------
def head_reference(feat, fc_w, fc_b, head_params):
    (w1, b1, w2, b2, wv, bv, wu, bu, ww, bw, wc, bc) = head_params
    h = ((feat @ fc_w + fc_b) @ w1 + b1) @ w2 + b2          # (N, 500)
    a_v = jnp.tanh(h @ wv + bv)
    a_u = jax.nn.sigmoid(h @ wu + bu)
    a = (a_v * a_u) @ ww + bw                               # (N, 1)
    a = jax.nn.softmax(a.T, axis=1)                         # (1, N)
    m = a @ h                                               # (1, 500)
    y_prob = jax.nn.sigmoid(m @ wc + bc)
    y_class = (y_prob >= 0.5).astype(jnp.float32)
    return y_prob, y_class, a


# ----------------------------------------------------------------------------
# Full forward (non-infer branch of the PyTorch module)
# ----------------------------------------------------------------------------
@jax.jit
def resnet18_gated_attention_forward(x, backbone_params, prepared_head):
    x = jnp.squeeze(x, axis=0)                      # (N, 3, H, W)
    pooled = resnet18_pooled(backbone_params, x)    # (N, 512) f32
    return mil_head(pooled, prepared_head)


if __name__ == "__main__":
    key = jax.random.PRNGKey(0)
    k_x, k_bb, k_head, k_feat = jax.random.split(key, 4)

    # bag of N=4 tiles, each 3x64x64 (ResNet18-compatible spatial size)
    x = jax.random.normal(k_x, (1, 4, 3, 64, 64), jnp.float32)

    raw_backbone = init_resnet18_params(k_bb)
    head_params = init_head_params(k_head)

    # One-time preparation (outside the per-call / jitted path).
    prepared_head = prepare_head_params(raw_backbone["fc_w"], raw_backbone["fc_b"],
                                        head_params)
    prepared_backbone = prepare_backbone_params(raw_backbone)

    # --- unit check: fused Pallas head vs pure-JAX unfolded reference --------
    feat_test = jax.random.normal(k_feat, (4, 512), jnp.float32)
    yp_k, yc_k, a_k = mil_head(feat_test, prepared_head)
    yp_r, _, a_r = head_reference(feat_test, raw_backbone["fc_w"],
                                  raw_backbone["fc_b"], head_params)
    jax.block_until_ready((yp_k, a_k))
    assert a_k.shape == (1, 4) and yp_k.shape == (1, 1)
    assert float(jnp.max(jnp.abs(a_k - a_r))) < 5e-2        # bf16 fold tolerance
    assert float(jnp.max(jnp.abs(yp_k - yp_r))) < 5e-2
    assert abs(float(jnp.sum(a_k)) - 1.0) < 1e-3            # exact softmax

    # --- full forward: ResNet18 backbone + fused MIL head --------------------
    y_prob, y_class, A = resnet18_gated_attention_forward(x, prepared_backbone,
                                                          prepared_head)
    jax.block_until_ready((y_prob, y_class, A))

    assert y_prob.shape == (1, 1)
    assert y_class.shape == (1, 1)
    assert A.shape == (1, 4)
    assert bool(jnp.isfinite(y_prob).all()) and bool(jnp.isfinite(A).all())
    assert abs(float(jnp.sum(A)) - 1.0) < 1e-3
    assert bool(jnp.all(y_class == (y_prob >= 0.5).astype(jnp.float32)))
    print("KERNEL_OK")
</pallas_src>

<mosaic_0001>
module attributes {stable_mosaic.version = 11 : i64} {
  func.func @mil_head_kernel(%arg0: memref<4x512xf32, #tpu.memory_space<vmem>>, %arg1: memref<512x384xbf16, #tpu.memory_space<vmem>>, %arg2: memref<1x384xf32, #tpu.memory_space<vmem>>, %arg3: memref<1x128xf32, #tpu.memory_space<vmem>>, %arg4: memref<1x1xf32, #tpu.memory_space<vmem>>, %arg5: memref<1x1xf32, #tpu.memory_space<vmem>>, %arg6: memref<1x1xf32, #tpu.memory_space<vmem>>, %arg7: memref<1x1xf32, #tpu.memory_space<vmem>>, %arg8: memref<4x1xf32, #tpu.memory_space<vmem>>) attributes {dimension_semantics = [], scalar_prefetch = 0 : i64, scratch_operands = 0 : i64, tpu.core_type = #tpu.core_type<tc>} {
    %c0 = arith.constant 0 : index
    %c0_0 = arith.constant 0 : index
    %0 = vector.load %arg0[%c0, %c0_0] : memref<4x512xf32, #tpu.memory_space<vmem>>, vector<4x512xf32>
    %1 = arith.truncf %0 : vector<4x512xf32> to vector<4x512xbf16>
    %c0_1 = arith.constant 0 : index
    %c0_2 = arith.constant 0 : index
    %2 = vector.load %arg1[%c0_1, %c0_2] : memref<512x384xbf16, #tpu.memory_space<vmem>>, vector<512x384xbf16>
    %cst = arith.constant dense<0.000000e+00> : vector<4x384xf32>
    %3 = tpu.matmul %1, %2, %cst {dimension_numbers = #tpu.dot_dimension_numbers<[1], [0], [0], [1], [0, 0, 1, 1], [], []>} : vector<4x512xbf16>, vector<512x384xbf16>, vector<4x384xf32> -> vector<4x384xf32>
    %c0_3 = arith.constant 0 : index
    %c0_4 = arith.constant 0 : index
    %4 = vector.load %arg2[%c0_3, %c0_4] : memref<1x384xf32, #tpu.memory_space<vmem>>, vector<1x384xf32>
    %5 = vector.broadcast %4 : vector<1x384xf32> to vector<4x384xf32>
    %6 = arith.addf %3, %5 : vector<4x384xf32>
    %7 = vector.extract_strided_slice %6 {offsets = [0, 0], sizes = [4, 128], strides = [1, 1]} : vector<4x384xf32> to vector<4x128xf32>
    %8 = math.tanh %7 : vector<4x128xf32>
    %9 = vector.extract_strided_slice %6 {offsets = [0, 128], sizes = [4, 128], strides = [1, 1]} : vector<4x384xf32> to vector<4x128xf32>
    %10 = arith.negf %9 : vector<4x128xf32>
    %11 = math.exp %10 : vector<4x128xf32>
    %cst_5 = arith.constant 1.000000e+00 : f32
    %12 = vector.broadcast %cst_5 : f32 to vector<4x128xf32>
    %13 = arith.addf %12, %11 : vector<4x128xf32>
    %14 = arith.divf %12, %13 : vector<4x128xf32>
    %15 = vector.extract_strided_slice %6 {offsets = [0, 256], sizes = [4, 1], strides = [1, 1]} : vector<4x384xf32> to vector<4x1xf32>
    %16 = arith.mulf %8, %14 : vector<4x128xf32>
    %c0_6 = arith.constant 0 : index
    %c0_7 = arith.constant 0 : index
    %17 = vector.load %arg3[%c0_6, %c0_7] : memref<1x128xf32, #tpu.memory_space<vmem>>, vector<1x128xf32>
    %18 = vector.broadcast %17 : vector<1x128xf32> to vector<4x128xf32>
    %19 = arith.mulf %16, %18 : vector<4x128xf32>
    %cst_8 = arith.constant dense<0.000000e+00> : vector<4xf32>
    %20 = vector.multi_reduction <add>, %19, %cst_8 [1] : vector<4x128xf32> to vector<4xf32>
    %21 = vector.shape_cast %20 : vector<4xf32> to vector<4x1xf32>
    %c0_9 = arith.constant 0 : index
    %c0_10 = arith.constant 0 : index
    %22 = vector.load %arg4[%c0_9, %c0_10] : memref<1x1xf32, #tpu.memory_space<vmem>>, vector<1x1xf32>
    %23 = vector.broadcast %22 : vector<1x1xf32> to vector<4x1xf32>
    %24 = arith.addf %21, %23 : vector<4x1xf32>
    %cst_11 = arith.constant dense<0xFF800000> : vector<1xf32>
    %25 = vector.multi_reduction <maximumf>, %24, %cst_11 [0] : vector<4x1xf32> to vector<1xf32>
    %26 = vector.shape_cast %25 : vector<1xf32> to vector<1x1xf32>
    %27 = vector.broadcast %26 : vector<1x1xf32> to vector<4x1xf32>
    %28 = arith.subf %24, %27 : vector<4x1xf32>
    %29 = math.exp %28 : vector<4x1xf32>
    %cst_12 = arith.constant dense<0.000000e+00> : vector<1xf32>
    %30 = vector.multi_reduction <add>, %29, %cst_12 [0] : vector<4x1xf32> to vector<1xf32>
    %31 = vector.shape_cast %30 : vector<1xf32> to vector<1x1xf32>
    %32 = vector.broadcast %31 : vector<1x1xf32> to vector<4x1xf32>
    %33 = arith.divf %29, %32 : vector<4x1xf32>
    %c0_13 = arith.constant 0 : index
    %c0_14 = arith.constant 0 : index
    %34 = vector.load %arg8[%c0_13, %c0_14] : memref<4x1xf32, #tpu.memory_space<vmem>>, vector<4x1xf32>
    tpu.vector_store %arg8[%c0_13, %c0_14], %33 {strides = array<i32>} : memref<4x1xf32, #tpu.memory_space<vmem>>, vector<4x1xf32>,
    %35 = arith.mulf %33, %15 : vector<4x1xf32>
    %cst_15 = arith.constant dense<0.000000e+00> : vector<1xf32>
    %36 = vector.multi_reduction <add>, %35, %cst_15 [0] : vector<4x1xf32> to vector<1xf32>
    %37 = vector.shape_cast %36 : vector<1xf32> to vector<1x1xf32>
    %c0_16 = arith.constant 0 : index
    %c0_17 = arith.constant 0 : index
    %38 = vector.load %arg5[%c0_16, %c0_17] : memref<1x1xf32, #tpu.memory_space<vmem>>, vector<1x1xf32>
    %39 = arith.addf %37, %38 : vector<1x1xf32>
    %40 = arith.negf %39 : vector<1x1xf32>
    %41 = math.exp %40 : vector<1x1xf32>
    %cst_18 = arith.constant 1.000000e+00 : f32
    %42 = vector.broadcast %cst_18 : f32 to vector<1x1xf32>
    %43 = arith.addf %42, %41 : vector<1x1xf32>
    %44 = arith.divf %42, %43 : vector<1x1xf32>
    %c0_19 = arith.constant 0 : index
    %c0_20 = arith.constant 0 : index
    %45 = vector.load %arg6[%c0_19, %c0_20] : memref<1x1xf32, #tpu.memory_space<vmem>>, vector<1x1xf32>
    tpu.vector_store %arg6[%c0_19, %c0_20], %44 {strides = array<i32>} : memref<1x1xf32, #tpu.memory_space<vmem>>, vector<1x1xf32>,
    %cst_21 = arith.constant 5.000000e-01 : f32
    %46 = vector.broadcast %cst_21 : f32 to vector<1x1xf32>
    %47 = arith.cmpf oge, %44, %46 : vector<1x1xf32>
    %48 = arith.extui %47 : vector<1x1xi1> to vector<1x1xi32>
    %49 = arith.sitofp %48 : vector<1x1xi32> to vector<1x1xf32>
    %c0_22 = arith.constant 0 : index
    %c0_23 = arith.constant 0 : index
    %50 = vector.load %arg7[%c0_22, %c0_23] : memref<1x1xf32, #tpu.memory_space<vmem>>, vector<1x1xf32>
    tpu.vector_store %arg7[%c0_22, %c0_23], %49 {strides = array<i32>} : memref<1x1xf32, #tpu.memory_space<vmem>>, vector<1x1xf32>,
    return
  }
}

</mosaic_0001>

<llo_original>
// kernel: tpu_custom_call.1
$region0: #{tpu_custom_call.1}
  #allocation0 [shape = 'u32[]', space=smem, size = 0x4, offset = 0x4, fixed_abs, tag = 'smem constant byte address 0x4 - core index']
  #allocation1 [shape = 'u32[144,128]{1,0:T(1,128)}', space=vmem, size = 0x12000, scoped, tag = 'internal scratch']
  #allocation2 [shape = 'f32[1,1]{1,0:T(1,128)S(1)}', space=vmem, size = 0x200, scoped, tag = 'scoped memory for tpu_custom_call.1']
  #allocation3 [shape = 'f32[1,1]{1,0:T(1,128)S(1)}', space=vmem, size = 0x200, scoped, tag = 'scoped memory for tpu_custom_call.1']
  %s0 = inlined_call_operand.hbm [shape: f32[4,512], index: 0, kind: input, shape index: {}]
  %s1 = inlined_call_operand.hbm [shape: bf16[512,384], index: 1, kind: input, shape index: {}]
  %s2 = inlined_call_operand.vmem [shape: f32[1,384], index: 2, kind: input, shape index: {}]
  %s3 = inlined_call_operand.vmem [shape: f32[1,128], index: 3, kind: input, shape index: {}]
  %s4 = inlined_call_operand.<no memory space> [shape: f32[1,1], index: 4, kind: input, shape index: {}]
  %s5 = inlined_call_operand.<no memory space> [shape: f32[1,1], index: 5, kind: input, shape index: {}]
  %s6 = inlined_call_operand.hbm [shape: f32[1,1], index: 6, kind: output, shape index: {0}]
  %s7 = inlined_call_operand.hbm [shape: f32[1,1], index: 7, kind: output, shape index: {1}]
  %s8 = inlined_call_operand.vmem [shape: f32[4,1], index: 8, kind: output, shape index: {2}]
  %9 = xla_tuple %s6, %s7, %s8
  %s10 = sld [smem:[#allocation0]]
  $region58: #{tpu_custom_call.1} parent=0
    _
  %s12 = ssub.s32 1, %s10
  %s13 = scalar_select 0, %s12, %s10
  %v14 = vstv %s4
  %15 = vst [vmem:[#allocation2] sm:$0x1] %v14
  %v16 = vstv %s5
  %17 = vst [vmem:[#allocation3] sm:$0x1] %v16
  $region1: #{tpu_custom_call.1} parent=0
    #allocation4 [shape = 'u8[8192]{0}', space=vmem, size = 0x2000, scoped, tag = 'input window, operand 0, single buffered']
    #allocation5 [shape = 's32[1]{0}', space=sflag, size = 0x4, scoped, tag = 'scoped memory for tpu_custom_call.1']
    #allocation6 [shape = 's32[1]{0}', space=sflag, size = 0x4, scoped, tag = 'scoped memory for tpu_custom_call.1']
    #allocation7 [shape = 'u8[393216]{0}', space=vmem, size = 0x60000, scoped, tag = 'input window, operand 1, single buffered']
    #allocation8 [shape = 's32[1]{0}', space=sflag, size = 0x4, scoped, tag = 'scoped memory for tpu_custom_call.1']
    #allocation9 [shape = 'u8[512]{0}', space=vmem, size = 0x400, scoped, tag = 'output window, operand 0, single buffered']
    #allocation10 [shape = 'u8[512]{0}', space=vmem, size = 0x400, scoped, tag = 'output window, operand 1, single buffered']
    #allocation11 [shape = 's32[1]{0}', space=sflag, size = 0x4, scoped, tag = 'scoped memory for tpu_custom_call.1']
    %18 = vsyncpa [#allocation5], 0
    %19 = vsyncpa [#allocation8], 0
    %20 = vsyncpa [#allocation6], 0
    %21 = vsyncpa [#allocation11], 0
    // Predicated region
    $region2: #{tpu_custom_call.1} parent=1 // pred_check
      _
    $region3: #{tpu_custom_call.1} parent=1 // pred_check_branch
      %23 = sbr.rel (0) target = $region5
    $region4: #{tpu_custom_call.1} parent=1 // pred_region
      %s25 = ssub.s32 256, 256
      %26 = vsyncadd [#allocation5], %s25
      %s28 = sshll.u32 [#allocation4], 4
      %s29 = int_to_ptr.vmem [resolvable:$true] %s28
      %31 = dma.hbm_to_vmem [thread:$0]  %s0, 256, %s29, [#allocation5]
    $region5: #{tpu_custom_call.1} parent=1 // pred_fallthru
      _
    // Predicated region
    $region6: #{tpu_custom_call.1} parent=1 // pred_check
      _
    $region7: #{tpu_custom_call.1} parent=1 // pred_check_branch
      %33 = sbr.rel (0) target = $region9
    $region8: #{tpu_custom_call.1} parent=1 // pred_region
      %s35 = ssub.s32 12288, 12288
      %36 = vsyncadd [#allocation8], %s35
      %s37 = sshll.u32 [#allocation7], 4
      %s38 = int_to_ptr.vmem [resolvable:$true] %s37
      %43 = dma.hbm_to_vmem [thread:$0]  %s1, 12288, %s38, [#allocation8], 192, 192, 12
    $region9: #{tpu_custom_call.1} parent=1 // pred_fallthru
      _
    // Predicated region
    $region10: #{tpu_custom_call.1} parent=1 // pred_check
      _
    $region11: #{tpu_custom_call.1} parent=1 // pred_check_branch
      %45 = sbr.rel (0) target = $region13
    $region12: #{tpu_custom_call.1} parent=1 // pred_region
      _
    $region13: #{tpu_custom_call.1} parent=1 // pred_fallthru
      _
    // Predicated region
    $region14: #{tpu_custom_call.1} parent=1 // pred_check
      _
    $region15: #{tpu_custom_call.1} parent=1 // pred_check_branch
      %47 = sbr.rel (0) target = $region17
    $region16: #{tpu_custom_call.1} parent=1 // pred_region
      _
    $region17: #{tpu_custom_call.1} parent=1 // pred_fallthru
      _
    // Predicated region
    $region18: #{tpu_custom_call.1} parent=1 // pred_check
      _
    $region19: #{tpu_custom_call.1} parent=1 // pred_check_branch
      %49 = sbr.rel (0) target = $region21
    $region20: #{tpu_custom_call.1} parent=1 // pred_region
      _
    $region21: #{tpu_custom_call.1} parent=1 // pred_fallthru
      _
    // Predicated region
    $region22: #{tpu_custom_call.1} parent=1 // pred_check
      _
    $region23: #{tpu_custom_call.1} parent=1 // pred_check_branch
      %51 = sbr.rel (0) target = $region25
    $region24: #{tpu_custom_call.1} parent=1 // pred_region
      _
    $region25: #{tpu_custom_call.1} parent=1 // pred_fallthru
      _
    // Predicated region
    $region26: #{tpu_custom_call.1} parent=1 // pred_check
      _
    $region27: #{tpu_custom_call.1} parent=1 // pred_check_branch
      %53 = sbr.rel (0) target = $region29
    $region28: #{tpu_custom_call.1} parent=1 // pred_region
      %54 = dma.done [#allocation5], 256
    $region29: #{tpu_custom_call.1} parent=1 // pred_fallthru
      _
    // Predicated region
    $region30: #{tpu_custom_call.1} parent=1 // pred_check
      _
    $region31: #{tpu_custom_call.1} parent=1 // pred_check_branch
      %56 = sbr.rel (0) target = $region33
    $region32: #{tpu_custom_call.1} parent=1 // pred_region
      %57 = dma.done [#allocation8], 12288
    $region33: #{tpu_custom_call.1} parent=1 // pred_fallthru
      _
    %v59 = vld [vmem:[#allocation4] sm:$0xff]
    %v60 = vld [vmem:[#allocation4 + $0x8] sm:$0xff]
    %v63 = vcombine.high %v59, %v59
    %v64 = vcombine.high %v60, %v60
    %v67 = vpack.c.bf16 %v59, %v59
    %v68 = vpack.c.bf16 %v63, %v63
    %v69 = vpack.c.bf16 %v60, %v60
    %v70 = vpack.c.bf16 %v64, %v64
    %v71 = vld [vmem:[#allocation7] sm:$0xff]
    %v72 = vld [vmem:[#allocation7 + $0x8] sm:$0xf]
    %v73 = vld [vmem:[#allocation7 + $0xc] sm:$0xff]
    %v74 = vld [vmem:[#allocation7 + $0x14] sm:$0xf]
    %v75 = vld [vmem:[#allocation7 + $0x18] sm:$0xff]
    %v76 = vld [vmem:[#allocation7 + $0x20] sm:$0xf]
    %v77 = vld [vmem:[#allocation7 + $0x24] sm:$0xff]
    %v78 = vld [vmem:[#allocation7 + $0x2c] sm:$0xf]
    %v79 = vld [vmem:[#allocation7 + $0x30] sm:$0xff]
    %v80 = vld [vmem:[#allocation7 + $0x38] sm:$0xf]
    %v81 = vld [vmem:[#allocation7 + $0x3c] sm:$0xff]
    %v82 = vld [vmem:[#allocation7 + $0x44] sm:$0xf]
    %v83 = vld [vmem:[#allocation7 + $0x48] sm:$0xff]
    %v84 = vld [vmem:[#allocation7 + $0x50] sm:$0xf]
    %v85 = vld [vmem:[#allocation7 + $0x54] sm:$0xff]
    %v86 = vld [vmem:[#allocation7 + $0x5c] sm:$0xf]
    %v87 = vld [vmem:[#allocation7 + $0x60] sm:$0xff]
    %v88 = vld [vmem:[#allocation7 + $0x68] sm:$0xf]
    %v89 = vld [vmem:[#allocation7 + $0x6c] sm:$0xff]
    %v90 = vld [vmem:[#allocation7 + $0x74] sm:$0xf]
    %v91 = vld [vmem:[#allocation7 + $0x78] sm:$0xff]
    %v92 = vld [vmem:[#allocation7 + $0x80] sm:$0xf]
    %v93 = vld [vmem:[#allocation7 + $0x84] sm:$0xff]
    %v94 = vld [vmem:[#allocation7 + $0x8c] sm:$0xf]
    %v95 = vld [vmem:[#allocation7 + $0x90] sm:$0xff]
    %v96 = vld [vmem:[#allocation7 + $0x98] sm:$0xf]
    %v97 = vld [vmem:[#allocation7 + $0x9c] sm:$0xff]
    %v98 = vld [vmem:[#allocation7 + $0xa4] sm:$0xf]
    %v99 = vld [vmem:[#allocation7 + $0xa8] sm:$0xff]
    %v100 = vld [vmem:[#allocation7 + $0xb0] sm:$0xf]
    %v101 = vld [vmem:[#allocation7 + $0xb4] sm:$0xff]
    %v102 = vld [vmem:[#allocation7 + $0xbc] sm:$0xf]
    %v103 = vld [vmem:[#allocation7 + $0xc0] sm:$0xff]
    %v104 = vld [vmem:[#allocation7 + $0xc8] sm:$0xf]
    %v105 = vld [vmem:[#allocation7 + $0xcc] sm:$0xff]
    %v106 = vld [vmem:[#allocation7 + $0xd4] sm:$0xf]
    %v107 = vld [vmem:[#allocation7 + $0xd8] sm:$0xff]
    %v108 = vld [vmem:[#allocation7 + $0xe0] sm:$0xf]
    %v109 = vld [vmem:[#allocation7 + $0xe4] sm:$0xff]
    %v110 = vld [vmem:[#allocation7 + $0xec] sm:$0xf]
    %v111 = vld [vmem:[#allocation7 + $0xf0] sm:$0xff]
    %v112 = vld [vmem:[#allocation7 + $0xf8] sm:$0xf]
    %v113 = vld [vmem:[#allocation7 + $0xfc] sm:$0xff]
    %v114 = vld [vmem:[#allocation7 + $0x104] sm:$0xf]
    %v115 = vld [vmem:[#allocation7 + $0x108] sm:$0xff]
    %v116 = vld [vmem:[#allocation7 + $0x110] sm:$0xf]
    %v117 = vld [vmem:[#allocation7 + $0x114] sm:$0xff]
    %v118 = vld [vmem:[#allocation7 + $0x11c] sm:$0xf]
    %v119 = vld [vmem:[#allocation7 + $0x120] sm:$0xff]
    %v120 = vld [vmem:[#allocation7 + $0x128] sm:$0xf]
    %v121 = vld [vmem:[#allocation7 + $0x12c] sm:$0xff]
    %v122 = vld [vmem:[#allocation7 + $0x134] sm:$0xf]
    %v123 = vld [vmem:[#allocation7 + $0x138] sm:$0xff]
    %v124 = vld [vmem:[#allocation7 + $0x140] sm:$0xf]
    %v125 = vld [vmem:[#allocation7 + $0x144] sm:$0xff]
    %v126 = vld [vmem:[#allocation7 + $0x14c] sm:$0xf]
    %v127 = vld [vmem:[#allocation7 + $0x150] sm:$0xff]
    %v128 = vld [vmem:[#allocation7 + $0x158] sm:$0xf]
    %v129 = vld [vmem:[#allocation7 + $0x15c] sm:$0xff]
    %v130 = vld [vmem:[#allocation7 + $0x164] sm:$0xf]
    %v131 = vld [vmem:[#allocation7 + $0x168] sm:$0xff]
    %v132 = vld [vmem:[#allocation7 + $0x170] sm:$0xf]
    %v133 = vld [vmem:[#allocation7 + $0x174] sm:$0xff]
    %v134 = vld [vmem:[#allocation7 + $0x17c] sm:$0xf]
    %v135 = vld [vmem:[#allocation7 + $0x180] sm:$0xff]
    %v136 = vld [vmem:[#allocation7 + $0x188] sm:$0xf]
    %v137 = vld [vmem:[#allocation7 + $0x18c] sm:$0xff]
    %v138 = vld [vmem:[#allocation7 + $0x194] sm:$0xf]
    %v139 = vld [vmem:[#allocation7 + $0x198] sm:$0xff]
    %v140 = vld [vmem:[#allocation7 + $0x1a0] sm:$0xf]
    %v141 = vld [vmem:[#allocation7 + $0x1a4] sm:$0xff]
    %v142 = vld [vmem:[#allocation7 + $0x1ac] sm:$0xf]
    %v143 = vld [vmem:[#allocation7 + $0x1b0] sm:$0xff]
    %v144 = vld [vmem:[#allocation7 + $0x1b8] sm:$0xf]
    %v145 = vld [vmem:[#allocation7 + $0x1bc] sm:$0xff]
    %v146 = vld [vmem:[#allocation7 + $0x1c4] sm:$0xf]
    %v147 = vld [vmem:[#allocation7 + $0x1c8] sm:$0xff]
    %v148 = vld [vmem:[#allocation7 + $0x1d0] sm:$0xf]
    %v149 = vld [vmem:[#allocation7 + $0x1d4] sm:$0xff]
    %v150 = vld [vmem:[#allocation7 + $0x1dc] sm:$0xf]
    %v151 = vld [vmem:[#allocation7 + $0x1e0] sm:$0xff]
    %v152 = vld [vmem:[#allocation7 + $0x1e8] sm:$0xf]
    %v153 = vld [vmem:[#allocation7 + $0x1ec] sm:$0xff]
    %v154 = vld [vmem:[#allocation7 + $0x1f4] sm:$0xf]
    %v155 = vld [vmem:[#allocation7 + $0x1f8] sm:$0xff]
    %v156 = vld [vmem:[#allocation7 + $0x200] sm:$0xf]
    %v157 = vld [vmem:[#allocation7 + $0x204] sm:$0xff]
    %v158 = vld [vmem:[#allocation7 + $0x20c] sm:$0xf]
    %v159 = vld [vmem:[#allocation7 + $0x210] sm:$0xff]
    %v160 = vld [vmem:[#allocation7 + $0x218] sm:$0xf]
    %v161 = vld [vmem:[#allocation7 + $0x21c] sm:$0xff]
    %v162 = vld [vmem:[#allocation7 + $0x224] sm:$0xf]
    %v163 = vld [vmem:[#allocation7 + $0x228] sm:$0xff]
    %v164 = vld [vmem:[#allocation7 + $0x230] sm:$0xf]
    %v165 = vld [vmem:[#allocation7 + $0x234] sm:$0xff]
    %v166 = vld [vmem:[#allocation7 + $0x23c] sm:$0xf]
    %v167 = vld [vmem:[#allocation7 + $0x240] sm:$0xff]
    %v168 = vld [vmem:[#allocation7 + $0x248] sm:$0xf]
    %v169 = vld [vmem:[#allocation7 + $0x24c] sm:$0xff]
    %v170 = vld [vmem:[#allocation7 + $0x254] sm:$0xf]
    %v171 = vld [vmem:[#allocation7 + $0x258] sm:$0xff]
    %v172 = vld [vmem:[#allocation7 + $0x260] sm:$0xf]
    %v173 = vld [vmem:[#allocation7 + $0x264] sm:$0xff]
    %v174 = vld [vmem:[#allocation7 + $0x26c] sm:$0xf]
    %v175 = vld [vmem:[#allocation7 + $0x270] sm:$0xff]
    %v176 = vld [vmem:[#allocation7 + $0x278] sm:$0xf]
    %v177 = vld [vmem:[#allocation7 + $0x27c] sm:$0xff]
    %v178 = vld [vmem:[#allocation7 + $0x284] sm:$0xf]
    %v179 = vld [vmem:[#allocation7 + $0x288] sm:$0xff]
    %v180 = vld [vmem:[#allocation7 + $0x290] sm:$0xf]
    %v181 = vld [vmem:[#allocation7 + $0x294] sm:$0xff]
    %v182 = vld [vmem:[#allocation7 + $0x29c] sm:$0xf]
    %v183 = vld [vmem:[#allocation7 + $0x2a0] sm:$0xff]
    %v184 = vld [vmem:[#allocation7 + $0x2a8] sm:$0xf]
    %v185 = vld [vmem:[#allocation7 + $0x2ac] sm:$0xff]
    %v186 = vld [vmem:[#allocation7 + $0x2b4] sm:$0xf]
    %v187 = vld [vmem:[#allocation7 + $0x2b8] sm:$0xff]
    %v188 = vld [vmem:[#allocation7 + $0x2c0] sm:$0xf]
    %v189 = vld [vmem:[#allocation7 + $0x2c4] sm:$0xff]
    %v190 = vld [vmem:[#allocation7 + $0x2cc] sm:$0xf]
    %v191 = vld [vmem:[#allocation7 + $0x2d0] sm:$0xff]
    %v192 = vld [vmem:[#allocation7 + $0x2d8] sm:$0xf]
    %v193 = vld [vmem:[#allocation7 + $0x2dc] sm:$0xff]
    %v194 = vld [vmem:[#allocation7 + $0x2e4] sm:$0xf]
    %v195 = vld [vmem:[#allocation7 + $0x2e8] sm:$0xff]
    %v196 = vld [vmem:[#allocation7 + $0x2f0] sm:$0xf]
    %v197 = vld [vmem:[#allocation7 + $0x2f4] sm:$0xff]
    %v198 = vld [vmem:[#allocation7 + $0x2fc] sm:$0xf]
    %v199 = vld [vmem:[%s2] sm:$0x7]
    %v201 = vlaneseq
    %v202 = vshrl.u32 %v201, 7
    %v203 = vsub.s32 0, %v202
    %v204 = vrot.slane %v199, %v203
    %v205 = vlaneseq
    %v206 = vshrl.u32 %v205, 7
    %v207 = vsub.s32 1, %v206
    %v208 = vrot.slane %v199, %v207
    %v209 = vlaneseq
    %v210 = vshrl.u32 %v209, 7
    %v211 = vsub.s32 2, %v210
    %v212 = vrot.slane %v199, %v211
    %v344 = vunpack.c.l.b16 %v71
    %v345 = vunpack.c.h.b16 %v71
    %v346 = vunpack.c.l.b16 %v72
    %v347 = vunpack.c.l.b16 %v73
    %v348 = vunpack.c.h.b16 %v73
    %v349 = vunpack.c.l.b16 %v74
    %v350 = vunpack.c.l.b16 %v75
    %v351 = vunpack.c.h.b16 %v75
    %v352 = vunpack.c.l.b16 %v76
    %v353 = vunpack.c.l.b16 %v77
    %v354 = vunpack.c.h.b16 %v77
    %v355 = vunpack.c.l.b16 %v78
    %v356 = vunpack.c.l.b16 %v79
    %v357 = vunpack.c.h.b16 %v79
    %v358 = vunpack.c.l.b16 %v80
    %v359 = vunpack.c.l.b16 %v81
    %v360 = vunpack.c.h.b16 %v81
    %v361 = vunpack.c.l.b16 %v82
    %v362 = vunpack.c.l.b16 %v83
    %v363 = vunpack.c.h.b16 %v83
    %v364 = vunpack.c.l.b16 %v84
    %v365 = vunpack.c.l.b16 %v85
    %v366 = vunpack.c.h.b16 %v85
    %v367 = vunpack.c.l.b16 %v86
    %v368 = vunpack.c.l.b16 %v87
    %v369 = vunpack.c.h.b16 %v87
    %v370 = vunpack.c.l.b16 %v88
    %v371 = vunpack.c.l.b16 %v89
    %v372 = vunpack.c.h.b16 %v89
    %v373 = vunpack.c.l.b16 %v90
    %v374 = vunpack.c.l.b16 %v91
    %v375 = vunpack.c.h.b16 %v91
    %v376 = vunpack.c.l.b16 %v92
    %v377 = vunpack.c.l.b16 %v93
    %v378 = vunpack.c.h.b16 %v93
    %v379 = vunpack.c.l.b16 %v94
    %v380 = vunpack.c.l.b16 %v95
    %v381 = vunpack.c.h.b16 %v95
    %v382 = vunpack.c.l.b16 %v96
    %v383 = vunpack.c.l.b16 %v97
    %v384 = vunpack.c.h.b16 %v97
    %v385 = vunpack.c.l.b16 %v98
    %v386 = vunpack.c.l.b16 %v99
    %v387 = vunpack.c.h.b16 %v99
    %v388 = vunpack.c.l.b16 %v100
    %v389 = vunpack.c.l.b16 %v101
    %v390 = vunpack.c.h.b16 %v101
    %v391 = vunpack.c.l.b16 %v102
    %v392 = vunpack.c.l.b16 %v103
    %v393 = vunpack.c.h.b16 %v103
    %v394 = vunpack.c.l.b16 %v104
    %v395 = vunpack.c.l.b16 %v105
    %v396 = vunpack.c.h.b16 %v105
    %v397 = vunpack.c.l.b16 %v106
    %v398 = vunpack.c.l.b16 %v107
    %v399 = vunpack.c.h.b16 %v107
    %v400 = vunpack.c.l.b16 %v108
    %v401 = vunpack.c.l.b16 %v109
    %v402 = vunpack.c.h.b16 %v109
    %v403 = vunpack.c.l.b16 %v110
    %v404 = vunpack.c.l.b16 %v111
    %v405 = vunpack.c.h.b16 %v111
    %v406 = vunpack.c.l.b16 %v112
    %v407 = vunpack.c.l.b16 %v113
    %v408 = vunpack.c.h.b16 %v113
    %v409 = vunpack.c.l.b16 %v114
    %v410 = vunpack.c.l.b16 %v115
    %v411 = vunpack.c.h.b16 %v115
    %v412 = vunpack.c.l.b16 %v116
    %v413 = vunpack.c.l.b16 %v117
    %v414 = vunpack.c.h.b16 %v117
    %v415 = vunpack.c.l.b16 %v118
    %v416 = vunpack.c.l.b16 %v119
    %v417 = vunpack.c.h.b16 %v119
    %v418 = vunpack.c.l.b16 %v120
    %v419 = vunpack.c.l.b16 %v121
    %v420 = vunpack.c.h.b16 %v121
    %v421 = vunpack.c.l.b16 %v122
    %v422 = vunpack.c.l.b16 %v123
    %v423 = vunpack.c.h.b16 %v123
    %v424 = vunpack.c.l.b16 %v124
    %v425 = vunpack.c.l.b16 %v125
    %v426 = vunpack.c.h.b16 %v125
    %v427 = vunpack.c.l.b16 %v126
    %v428 = vunpack.c.l.b16 %v127
    %v429 = vunpack.c.h.b16 %v127
    %v430 = vunpack.c.l.b16 %v128
    %v431 = vunpack.c.l.b16 %v129
    %v432 = vunpack.c.h.b16 %v129
    %v433 = vunpack.c.l.b16 %v130
    %v434 = vunpack.c.l.b16 %v131
    %v435 = vunpack.c.h.b16 %v131
    %v436 = vunpack.c.l.b16 %v132
    %v437 = vunpack.c.l.b16 %v133
    %v438 = vunpack.c.h.b16 %v133
    %v439 = vunpack.c.l.b16 %v134
    %v440 = vunpack.c.l.b16 %v135
    %v441 = vunpack.c.h.b16 %v135
    %v442 = vunpack.c.l.b16 %v136
    %v443 = vunpack.c.l.b16 %v137
    %v444 = vunpack.c.h.b16 %v137
    %v445 = vunpack.c.l.b16 %v138
    %v446 = vunpack.c.l.b16 %v139
    %v447 = vunpack.c.h.b16 %v139
    %v448 = vunpack.c.l.b16 %v140
    %v449 = vunpack.c.l.b16 %v141
    %v450 = vunpack.c.h.b16 %v141
    %v451 = vunpack.c.l.b16 %v142
    %v452 = vunpack.c.l.b16 %v143
    %v453 = vunpack.c.h.b16 %v143
    %v454 = vunpack.c.l.b16 %v144
    %v455 = vunpack.c.l.b16 %v145
    %v456 = vunpack.c.h.b16 %v145
    %v457 = vunpack.c.l.b16 %v146
    %v458 = vunpack.c.l.b16 %v147
    %v459 = vunpack.c.h.b16 %v147
    %v460 = vunpack.c.l.b16 %v148
    %v461 = vunpack.c.l.b16 %v149
    %v462 = vunpack.c.h.b16 %v149
    %v463 = vunpack.c.l.b16 %v150
    %v464 = vunpack.c.l.b16 %v151
    %v465 = vunpack.c.h.b16 %v151
    %v466 = vunpack.c.l.b16 %v152
    %v467 = vunpack.c.l.b16 %v153
    %v468 = vunpack.c.h.b16 %v153
    %v469 = vunpack.c.l.b16 %v154
    %v470 = vunpack.c.l.b16 %v155
    %v471 = vunpack.c.h.b16 %v155
    %v472 = vunpack.c.l.b16 %v156
    %v473 = vunpack.c.l.b16 %v157
    %v474 = vunpack.c.h.b16 %v157
    %v475 = vunpack.c.l.b16 %v158
    %v476 = vunpack.c.l.b16 %v159
    %v477 = vunpack.c.h.b16 %v159
    %v478 = vunpack.c.l.b16 %v160
    %v479 = vunpack.c.l.b16 %v161
    %v480 = vunpack.c.h.b16 %v161
    %v481 = vunpack.c.l.b16 %v162
    %v482 = vunpack.c.l.b16 %v163
    %v483 = vunpack.c.h.b16 %v163
    %v484 = vunpack.c.l.b16 %v164
    %v485 = vunpack.c.l.b16 %v165
    %v486 = vunpack.c.h.b16 %v165
    %v487 = vunpack.c.l.b16 %v166
    %v488 = vunpack.c.l.b16 %v167
    %v489 = vunpack.c.h.b16 %v167
    %v490 = vunpack.c.l.b16 %v168
    %v491 = vunpack.c.l.b16 %v169
    %v492 = vunpack.c.h.b16 %v169
    %v493 = vunpack.c.l.b16 %v170
    %v494 = vunpack.c.l.b16 %v171
    %v495 = vunpack.c.h.b16 %v171
    %v496 = vunpack.c.l.b16 %v172
    %v497 = vunpack.c.l.b16 %v173
    %v498 = vunpack.c.h.b16 %v173
    %v499 = vunpack.c.l.b16 %v174
    %v500 = vunpack.c.l.b16 %v175
    %v501 = vunpack.c.h.b16 %v175
    %v502 = vunpack.c.l.b16 %v176
    %v503 = vunpack.c.l.b16 %v177
    %v504 = vunpack.c.h.b16 %v177
    %v505 = vunpack.c.l.b16 %v178
    %v506 = vunpack.c.l.b16 %v179
    %v507 = vunpack.c.h.b16 %v179
    %v508 = vunpack.c.l.b16 %v180
    %v509 = vunpack.c.l.b16 %v181
    %v510 = vunpack.c.h.b16 %v181
    %v511 = vunpack.c.l.b16 %v182
    %v512 = vunpack.c.l.b16 %v183
    %v513 = vunpack.c.h.b16 %v183
    %v514 = vunpack.c.l.b16 %v184
    %v515 = vunpack.c.l.b16 %v185
    %v516 = vunpack.c.h.b16 %v185
    %v517 = vunpack.c.l.b16 %v186
    %v518 = vunpack.c.l.b16 %v187
    %v519 = vunpack.c.h.b16 %v187
    %v520 = vunpack.c.l.b16 %v188
    %v521 = vunpack.c.l.b16 %v189
    %v522 = vunpack.c.h.b16 %v189
    %v523 = vunpack.c.l.b16 %v190
    %v524 = vunpack.c.l.b16 %v191
    %v525 = vunpack.c.h.b16 %v191
    %v526 = vunpack.c.l.b16 %v192
    %v527 = vunpack.c.l.b16 %v193
    %v528 = vunpack.c.h.b16 %v193
    %v529 = vunpack.c.l.b16 %v194
    %v530 = vunpack.c.l.b16 %v195
    %v531 = vunpack.c.h.b16 %v195
    %v532 = vunpack.c.l.b16 %v196
    %v533 = vunpack.c.l.b16 %v197
    %v534 = vunpack.c.h.b16 %v197
    %v535 = vunpack.c.l.b16 %v198
    %v536 = vpack.c.b16 %v347, %v344
    %v537 = vpack.c.b16 %v348, %v345
    %v538 = vpack.c.b16 %v349, %v346
    %v539 = vpack.c.b16 %v353, %v350
    %v540 = vpack.c.b16 %v354, %v351
    %v541 = vpack.c.b16 %v355, %v352
    %v542 = vpack.c.b16 %v359, %v356
    %v543 = vpack.c.b16 %v360, %v357
    %v544 = vpack.c.b16 %v361, %v358
    %v545 = vpack.c.b16 %v365, %v362
    %v546 = vpack.c.b16 %v366, %v363
    %v547 = vpack.c.b16 %v367, %v364
    %v548 = vpack.c.b16 %v371, %v368
    %v549 = vpack.c.b16 %v372, %v369
    %v550 = vpack.c.b16 %v373, %v370
    %v551 = vpack.c.b16 %v377, %v374
    %v552 = vpack.c.b16 %v378, %v375
    %v553 = vpack.c.b16 %v379, %v376
    %v554 = vpack.c.b16 %v383, %v380
    %v555 = vpack.c.b16 %v384, %v381
    %v556 = vpack.c.b16 %v385, %v382
    %v557 = vpack.c.b16 %v389, %v386
    %v558 = vpack.c.b16 %v390, %v387
    %v559 = vpack.c.b16 %v391, %v388
    %v560 = vpack.c.b16 %v395, %v392
    %v561 = vpack.c.b16 %v396, %v393
    %v562 = vpack.c.b16 %v397, %v394
    %v563 = vpack.c.b16 %v401, %v398
    %v564 = vpack.c.b16 %v402, %v399
    %v565 = vpack.c.b16 %v403, %v400
    %v566 = vpack.c.b16 %v407, %v404
    %v567 = vpack.c.b16 %v408, %v405
    %v568 = vpack.c.b16 %v409, %v406
    %v569 = vpack.c.b16 %v413, %v410
    %v570 = vpack.c.b16 %v414, %v411
    %v571 = vpack.c.b16 %v415, %v412
    %v572 = vpack.c.b16 %v419, %v416
    %v573 = vpack.c.b16 %v420, %v417
    %v574 = vpack.c.b16 %v421, %v418
    %v575 = vpack.c.b16 %v425, %v422
    %v576 = vpack.c.b16 %v426, %v423
    %v577 = vpack.c.b16 %v427, %v424
    %v578 = vpack.c.b16 %v431, %v428
    %v579 = vpack.c.b16 %v432, %v429
    %v580 = vpack.c.b16 %v433, %v430
    %v581 = vpack.c.b16 %v437, %v434
    %v582 = vpack.c.b16 %v438, %v435
    %v583 = vpack.c.b16 %v439, %v436
    %v584 = vpack.c.b16 %v443, %v440
    %v585 = vpack.c.b16 %v444, %v441
    %v586 = vpack.c.b16 %v445, %v442
    %v587 = vpack.c.b16 %v449, %v446
    %v588 = vpack.c.b16 %v450, %v447
    %v589 = vpack.c.b16 %v451, %v448
    %v590 = vpack.c.b16 %v455, %v452
    %v591 = vpack.c.b16 %v456, %v453
    %v592 = vpack.c.b16 %v457, %v454
    %v593 = vpack.c.b16 %v461, %v458
    %v594 = vpack.c.b16 %v462, %v459
    %v595 = vpack.c.b16 %v463, %v460
    %v596 = vpack.c.b16 %v467, %v464
    %v597 = vpack.c.b16 %v468, %v465
    %v598 = vpack.c.b16 %v469, %v466
    %v599 = vpack.c.b16 %v473, %v470
    %v600 = vpack.c.b16 %v474, %v471
    %v601 = vpack.c.b16 %v475, %v472
    %v602 = vpack.c.b16 %v479, %v476
    %v603 = vpack.c.b16 %v480, %v477
    %v604 = vpack.c.b16 %v481, %v478
    %v605 = vpack.c.b16 %v485, %v482
    %v606 = vpack.c.b16 %v486, %v483
    %v607 = vpack.c.b16 %v487, %v484
    %v608 = vpack.c.b16 %v491, %v488
    %v609 = vpack.c.b16 %v492, %v489
    %v610 = vpack.c.b16 %v493, %v490
    %v611 = vpack.c.b16 %v497, %v494
    %v612 = vpack.c.b16 %v498, %v495
    %v613 = vpack.c.b16 %v499, %v496
    %v614 = vpack.c.b16 %v503, %v500
    %v615 = vpack.c.b16 %v504, %v501
    %v616 = vpack.c.b16 %v505, %v502
    %v617 = vpack.c.b16 %v509, %v506
    %v618 = vpack.c.b16 %v510, %v507
    %v619 = vpack.c.b16 %v511, %v508
    %v620 = vpack.c.b16 %v515, %v512
    %v621 = vpack.c.b16 %v516, %v513
    %v622 = vpack.c.b16 %v517, %v514
    %v623 = vpack.c.b16 %v521, %v518
    %v624 = vpack.c.b16 %v522, %v519
    %v625 = vpack.c.b16 %v523, %v520
    %v626 = vpack.c.b16 %v527, %v524
    %v627 = vpack.c.b16 %v528, %v525
    %v628 = vpack.c.b16 %v529, %v526
    %v629 = vpack.c.b16 %v533, %v530
    %v630 = vpack.c.b16 %v534, %v531
    %v631 = vpack.c.b16 %v535, %v532
    %728 = vmatprep.subr.bf16.mxu0 %v558
    %729 = vmatpush1.bf16.msra.mxu0 %v557
    %730 = vmatprep.subr.bf16.mxu0 %v555
    %731 = vmatpush1.bf16.msra.mxu0 %v554
    %732 = vmatprep.subr.bf16.mxu0 %v552
    %733 = vmatpush1.bf16.msra.mxu0 %v551
    %734 = vmatprep.subr.bf16.mxu0 %v549
    %735 = vmatpush1.bf16.msra.mxu0 %v548
    %736 = vmatprep.subr.bf16.mxu0 %v546
    %737 = vmatpush1.bf16.msra.mxu0 %v545
    %738 = vmatprep.subr.bf16.mxu0 %v543
    %739 = vmatpush1.bf16.msra.mxu0 %v542
    %740 = vmatprep.subr.bf16.mxu0 %v540
    %741 = vmatpush1.bf16.msra.mxu0 %v539
    %742 = vmatprep.subr.bf16.mxu0 %v537
    %743 = vmatpush1.bf16.msra.mxu0 %v536
    %744 = vmatprep.subr.bf16.mxu0 %v582
    %745 = vmatpush2.bf16.msra.mxu0 %v581
    %746 = vmatprep.subr.bf16.mxu0 %v579
    %747 = vmatpush2.bf16.msra.mxu0 %v578
    %748 = vmatprep.subr.bf16.mxu0 %v576
    %749 = vmatpush2.bf16.msra.mxu0 %v575
    %750 = vmatprep.subr.bf16.mxu0 %v573
    %751 = vmatpush2.bf16.msra.mxu0 %v572
    %752 = vmatprep.subr.bf16.mxu0 %v570
    %753 = vmatpush2.bf16.msra.mxu0 %v569
    %754 = vmatprep.subr.bf16.mxu0 %v567
    %755 = vmatpush2.bf16.msra.mxu0 %v566
    %756 = vmatprep.subr.bf16.mxu0 %v564
    %757 = vmatpush2.bf16.msra.mxu0 %v563
    %758 = vmatprep.subr.bf16.mxu0 %v561
    %759 = vmatpush2.bf16.msra.mxu0 %v560
    %760 = vmatprep.mubr.bf16.mxu0 %v68
    %761 = vmatmul.mubr.bf16.gmra.mxu0 %v67
    %v762 = vpop.f32.mrf.mxu0
    %v763 = vadd.f32 %v204, %v762
    %v764 = vpop.f32.mrf.mxu0
    %v765 = vadd.f32 %v208, %v764
    %v766 = vpop.f32.mrf.mxu0
    %v767 = vpop.f32.mrf.mxu0
    %768 = vdwg.mxu0
    %769 = vmatprep.subr.bf16.mxu0 %v606
    %770 = vmatpush1.bf16.msra.mxu0 %v605
    %771 = vmatprep.subr.bf16.mxu0 %v603
    %772 = vmatpush1.bf16.msra.mxu0 %v602
    %773 = vmatprep.subr.bf16.mxu0 %v600
    %774 = vmatpush1.bf16.msra.mxu0 %v599
    %775 = vmatprep.subr.bf16.mxu0 %v597
    %776 = vmatpush1.bf16.msra.mxu0 %v596
    %777 = vmatprep.subr.bf16.mxu0 %v594
    %778 = vmatpush1.bf16.msra.mxu0 %v593
    %779 = vmatprep.subr.bf16.mxu0 %v591
    %780 = vmatpush1.bf16.msra.mxu0 %v590
    %781 = vmatprep.subr.bf16.mxu0 %v588
    %782 = vmatpush1.bf16.msra.mxu0 %v587
    %783 = vmatprep.subr.bf16.mxu0 %v585
    %784 = vmatpush1.bf16.msra.mxu0 %v584
    %785 = vmatprep.subr.bf16.mxu0 %v630
    %786 = vmatpush2.bf16.msra.mxu0 %v629
    %787 = vmatprep.subr.bf16.mxu0 %v627
    %788 = vmatpush2.bf16.msra.mxu0 %v626
    %789 = vmatprep.subr.bf16.mxu0 %v624
    %790 = vmatpush2.bf16.msra.mxu0 %v623
    %791 = vmatprep.subr.bf16.mxu0 %v621
    %792 = vmatpush2.bf16.msra.mxu0 %v620
    %793 = vmatprep.subr.bf16.mxu0 %v618
    %794 = vmatpush2.bf16.msra.mxu0 %v617
    %795 = vmatprep.subr.bf16.mxu0 %v615
    %796 = vmatpush2.bf16.msra.mxu0 %v614
    %797 = vmatprep.subr.bf16.mxu0 %v612
    %798 = vmatpush2.bf16.msra.mxu0 %v611
    %799 = vmatprep.subr.bf16.mxu0 %v609
    %800 = vmatpush2.bf16.msra.mxu0 %v608
    %801 = vmatprep.mubr.bf16.mxu0 %v70
    %802 = vmatmul.mubr.bf16.gmra.mxu0 %v69
    %v803 = vpop.f32.mrf.mxu0
    %v804 = vadd.f32 %v763, %v803
    %v805 = vpop.f32.mrf.mxu0
    %v806 = vadd.f32 %v765, %v805
    %v807 = vpop.f32.mrf.mxu0
    %v808 = vpop.f32.mrf.mxu0
    %809 = vdwg.mxu0
    %810 = vmatprep.subr.bf16.mxu0 0
    %811 = vmatpush1.bf16.msra.mxu0 %v559
    %812 = vmatprep.subr.bf16.mxu0 0
    %813 = vmatpush1.bf16.msra.mxu0 %v556
    %814 = vmatprep.subr.bf16.mxu0 0
    %815 = vmatpush1.bf16.msra.mxu0 %v553
    %816 = vmatprep.subr.bf16.mxu0 0
    %817 = vmatpush1.bf16.msra.mxu0 %v550
    %818 = vmatprep.subr.bf16.mxu0 0
    %819 = vmatpush1.bf16.msra.mxu0 %v547
    %820 = vmatprep.subr.bf16.mxu0 0
    %821 = vmatpush1.bf16.msra.mxu0 %v544
    %822 = vmatprep.subr.bf16.mxu0 0
    %823 = vmatpush1.bf16.msra.mxu0 %v541
    %824 = vmatprep.subr.bf16.mxu0 0
    %825 = vmatpush1.bf16.msra.mxu0 %v538
    %826 = vmatprep.subr.bf16.mxu0 0
    %827 = vmatpush2.bf16.msra.mxu0 %v583
    %828 = vmatprep.subr.bf16.mxu0 0
    %829 = vmatpush2.bf16.msra.mxu0 %v580
    %830 = vmatprep.subr.bf16.mxu0 0
    %831 = vmatpush2.bf16.msra.mxu0 %v577
    %832 = vmatprep.subr.bf16.mxu0 0
    %833 = vmatpush2.bf16.msra.mxu0 %v574
    %834 = vmatprep.subr.bf16.mxu0 0
    %835 = vmatpush2.bf16.msra.mxu0 %v571
    %836 = vmatprep.subr.bf16.mxu0 0
    %837 = vmatpush2.bf16.msra.mxu0 %v568
    %838 = vmatprep.subr.bf16.mxu0 0
    %839 = vmatpush2.bf16.msra.mxu0 %v565
    %840 = vmatprep.subr.bf16.mxu0 0
    %841 = vmatpush2.bf16.msra.mxu0 %v562
    %842 = vmatprep.mubr.bf16.mxu0 %v68
    %843 = vmatmul.mubr.bf16.gmra.mxu0 %v67
    %v844 = vpop.f32.mrf.mxu0
    %v845 = vadd.f32 %v212, %v844
    %v846 = vpop.f32.mrf.mxu0
    %v847 = vpop.f32.mrf.mxu0
    %v848 = vpop.f32.mrf.mxu0
    %849 = vdwg.mxu0
    %850 = vmatprep.subr.bf16.mxu0 0
    %851 = vmatpush1.bf16.msra.mxu0 %v607
    %852 = vmatprep.subr.bf16.mxu0 0
    %853 = vmatpush1.bf16.msra.mxu0 %v604
    %854 = vmatprep.subr.bf16.mxu0 0
    %855 = vmatpush1.bf16.msra.mxu0 %v601
    %856 = vmatprep.subr.bf16.mxu0 0
    %857 = vmatpush1.bf16.msra.mxu0 %v598
    %858 = vmatprep.subr.bf16.mxu0 0
    %859 = vmatpush1.bf16.msra.mxu0 %v595
    %860 = vmatprep.subr.bf16.mxu0 0
    %861 = vmatpush1.bf16.msra.mxu0 %v592
    %862 = vmatprep.subr.bf16.mxu0 0
    %863 = vmatpush1.bf16.msra.mxu0 %v589
    %864 = vmatprep.subr.bf16.mxu0 0
    %865 = vmatpush1.bf16.msra.mxu0 %v586
    %866 = vmatprep.subr.bf16.mxu0 0
    %867 = vmatpush2.bf16.msra.mxu0 %v631
    %868 = vmatprep.subr.bf16.mxu0 0
    %869 = vmatpush2.bf16.msra.mxu0 %v628
    %870 = vmatprep.subr.bf16.mxu0 0
    %871 = vmatpush2.bf16.msra.mxu0 %v625
    %872 = vmatprep.subr.bf16.mxu0 0
    %873 = vmatpush2.bf16.msra.mxu0 %v622
    %874 = vmatprep.subr.bf16.mxu0 0
    %875 = vmatpush2.bf16.msra.mxu0 %v619
    %876 = vmatprep.subr.bf16.mxu0 0
    %877 = vmatpush2.bf16.msra.mxu0 %v616
    %878 = vmatprep.subr.bf16.mxu0 0
    %879 = vmatpush2.bf16.msra.mxu0 %v613
    %880 = vmatprep.subr.bf16.mxu0 0
    %881 = vmatpush2.bf16.msra.mxu0 %v610
    %882 = vmatprep.mubr.bf16.mxu0 %v70
    %883 = vmatmul.mubr.bf16.gmra.mxu0 %v69
    %v884 = vpop.f32.mrf.mxu0
    %v885 = vadd.f32 %v845, %v884
    %v886 = vpop.f32.mrf.mxu0
    %v887 = vpop.f32.mrf.mxu0
    %v888 = vpop.f32.mrf.mxu0
    %889 = vdwg.mxu0
    %v890 = vtanh.pop %v804
    %v891 = vxor.u32 %v806, 2147483648
    %v892 = vmul.f32 %v891, 1.442695
    %v893 = vpow.pop %v892
    %v894 = vadd.f32 %v893, 1.0
    %v895 = vrcp.pop %v894
    %v896 = vmul.f32 1.0, %v895
    %v897 = vmul.f32 %v890, %v896
    %v898 = vld [vmem:[%s3] sm:$0x1]
    %v900 = vlaneseq
    %v901 = vshrl.u32 %v900, 7
    %v902 = vsub.s32 0, %v901
    %v903 = vrot.slane %v898, %v902
    %v905 = vmul.f32 %v897, %v903
    %vm906 = vcmask 1043456
    %v907 = vsel %vm906, %v905, 0.0
    %908 = vadd.xlane.f32.xlu0 %v907
    %v909 = vpop.xlane.xlu0 %908
    %v910 = vld [vmem:[#allocation2] sm:$0x1]
    %v912 = vlaneseq
    %v913 = vshrl.u32 %v912, 7
    %v914 = vsub.s32 0, %v913
    %v915 = vrot.slane %v910, %v914
    %v917 = vadd.f32 %v909, %v915
    %vm918 = vcmask 3072
    %v919 = vsel %vm918, %v917, -inf
    %v920 = vrot.slane %v919, 4
    %v921 = vmax.f32 %v919, %v920
    %v922 = vrot.slane %v921, 2
    %v923 = vmax.f32 %v921, %v922
    %v924 = vrot.slane %v923, 1
    %v925 = vmax.f32 %v923, %v924
    %v926 = vsub.f32 %v917, %v925
    %v927 = vmul.f32 %v926, 1.442695
    %v928 = vpow.pop %v927
    %v929 = vsel %vm918, %v928, 0.0
    %v930 = vrot.slane %v929, 4
    %v931 = vadd.f32 %v929, %v930
    %v932 = vrot.slane %v931, 2
    %v933 = vadd.f32 %v931, %v932
    %v934 = vrot.slane %v933, 1
    %v935 = vadd.f32 %v933, %v934
    %v936 = vrcp.pop %v935
    %v937 = vmul.f32 %v928, %v936
    %938 = vst.msk [vmem:[%s8] sm:$0xf] %vm918, %v937
    %v939 = vmul.f32 %v937, %v885
    %v940 = vsel %vm918, %v939, 0.0
    %v941 = vrot.slane %v940, 4
    %v942 = vadd.f32 %v940, %v941
    %v943 = vrot.slane %v942, 2
    %v944 = vadd.f32 %v942, %v943
    %v945 = vrot.slane %v944, 1
    %v946 = vadd.f32 %v944, %v945
    %v947 = vld [vmem:[#allocation3] sm:$0x1]
    %v948 = vadd.f32 %v946, %v947
    %v949 = vxor.u32 %v948, 2147483648
    %v950 = vmul.f32 %v949, 1.442695
    %v951 = vpow.pop %v950
    %v952 = vadd.f32 %v951, 1.0
    %v953 = vrcp.pop %v952
    %v954 = vmul.f32 1.0, %v953
    %vm955 = vcmask 0
    %956 = vst.msk [vmem:[#allocation9] sm:$0x1] %vm955, %v954
    %vm957 = vcmp.ge.f32.partialorder %v954, 0.5
    %v958 = vsel %vm957, 1, 0
    %v959 = vcvt.s32.f32 %v958
    %960 = vst.msk [vmem:[#allocation10] sm:$0x1] %vm955, %v959
    // Predicated region
    $region34: #{tpu_custom_call.1} parent=1 // pred_check
      _
    $region35: #{tpu_custom_call.1} parent=1 // pred_check_branch
      %962 = sbr.rel (0) target = $region37
    $region36: #{tpu_custom_call.1} parent=1 // pred_region
      %s964 = ssub.s32 16, 16
      %965 = vsyncadd [#allocation6], %s964
      %s967 = sshll.u32 [#allocation9], 4
      %s968 = int_to_ptr.vmem [resolvable:$true] %s967
      %970 = dma.vmem_to_hbm [thread:$0]  %s968, 16, %s6, [#allocation6]
    $region37: #{tpu_custom_call.1} parent=1 // pred_fallthru
      _
    // Predicated region
    $region38: #{tpu_custom_call.1} parent=1 // pred_check
      _
    $region39: #{tpu_custom_call.1} parent=1 // pred_check_branch
      %972 = sbr.rel (0) target = $region41
    $region40: #{tpu_custom_call.1} parent=1 // pred_region
      %s974 = ssub.s32 16, 16
      %975 = vsyncadd [#allocation11], %s974
      %s977 = sshll.u32 [#allocation10], 4
      %s978 = int_to_ptr.vmem [resolvable:$true] %s977
      %980 = dma.vmem_to_hbm [thread:$0]  %s978, 16, %s7, [#allocation11]
    $region41: #{tpu_custom_call.1} parent=1 // pred_fallthru
      _
    // Predicated region
    $region42: #{tpu_custom_call.1} parent=1 // pred_check
      _
    $region43: #{tpu_custom_call.1} parent=1 // pred_check_branch
      %982 = sbr.rel (0) target = $region45
    $region44: #{tpu_custom_call.1} parent=1 // pred_region
      _
    $region45: #{tpu_custom_call.1} parent=1 // pred_fallthru
      _
    // Predicated region
    $region46: #{tpu_custom_call.1} parent=1 // pred_check
      _
    $region47: #{tpu_custom_call.1} parent=1 // pred_check_branch
      %984 = sbr.rel (0) target = $region49
    $region48: #{tpu_custom_call.1} parent=1 // pred_region
      %985 = dma.done [#allocation6], 16
    $region49: #{tpu_custom_call.1} parent=1 // pred_fallthru
      _
    // Predicated region
    $region50: #{tpu_custom_call.1} parent=1 // pred_check
      _
    $region51: #{tpu_custom_call.1} parent=1 // pred_check_branch
      %987 = sbr.rel (0) target = $region53
    $region52: #{tpu_custom_call.1} parent=1 // pred_region
      %988 = dma.done [#allocation11], 16
    $region53: #{tpu_custom_call.1} parent=1 // pred_fallthru
      _
    // Predicated region
    $region54: #{tpu_custom_call.1} parent=1 // pred_check
      _
    $region55: #{tpu_custom_call.1} parent=1 // pred_check_branch
      %990 = sbr.rel (0) target = $region57
    $region56: #{tpu_custom_call.1} parent=1 // pred_region
      _
    $region57: #{tpu_custom_call.1} parent=1 // pred_fallthru
      _
    %991 = vsyncpa [#allocation5], 1
    %992 = vsyncpa [#allocation8], 1
    %993 = vsyncpa [#allocation6], 1
    %994 = vsyncpa [#allocation11], 1

</llo_original>
